<compile_context>
chip_gen: v5e
topology: v5e:2x2
jax: 0.10.0
libtpu: 0.0.40
codegen_flags: <defaults>
</compile_context>

<pallas_src>
import functools

import jax
import jax.numpy as jnp
from jax.experimental import pallas as pl
from jax.experimental.pallas import tpu as pltpu


def _round_up(x, m):
    return ((x + m - 1) // m) * m


def _matmul_kernel(a_ref, b_ref, o_ref, acc_ref, *, relu):
    """One (tm, tk) x (tk, n) MXU step of C = A @ B with K-axis accumulation."""
    k = pl.program_id(1)

    @pl.when(k == 0)
    def _init():
        acc_ref[...] = jnp.zeros_like(acc_ref)

    acc_ref[...] += jnp.dot(a_ref[...], b_ref[...],
                            preferred_element_type=jnp.float32)

    @pl.when(k == pl.num_programs(1) - 1)
    def _finalize():
        out = acc_ref[...]
        if relu:
            out = jnp.maximum(out, 0.0)
        o_ref[...] = out.astype(o_ref.dtype)


def _tiled_matmul(a, b, *, relu, tm, tk, out_dtype):
    """C = A @ B (optionally relu'd).

    Grid is (rows // tm, K // tk): row tiles are independent ("parallel",
    megacore-shardable on v7x), the K axis is a sequential reduction
    ("arbitrary") into an f32 VMEM accumulator.  Caller guarantees
    tile-aligned, lane-dense shapes (rows % tm == 0, K % tk == 0, N % 128 == 0
    or full-extent K).
    """
    m, kdim = a.shape
    kdim2, n = b.shape
    assert kdim == kdim2, (kdim, kdim2)
    assert m % tm == 0 and kdim % tk == 0 and n % 128 == 0, (m, kdim, n, tm, tk)

    nm, nk = m // tm, kdim // tk
    kernel = functools.partial(_matmul_kernel, relu=relu)

    # Per-step VMEM need: double-buffered A/B/out tiles + f32 accumulator.
    # 2x headroom, floored at 32 MiB (raises v5e's 16 MiB default scoped
    # limit), capped at 48 MiB (safely under v7x's 64 MiB physical VMEM).
    out_bytes = jnp.dtype(out_dtype).itemsize
    vmem_need = (2 * tm * tk * a.dtype.itemsize
                 + 2 * tk * n * b.dtype.itemsize
                 + 2 * tm * n * out_bytes
                 + tm * n * 4)
    vmem_limit = int(min(max(2 * vmem_need, 32 * 1024 * 1024),
                         48 * 1024 * 1024))

    return pl.pallas_call(
        kernel,
        out_shape=jax.ShapeDtypeStruct((m, n), out_dtype),
        grid_spec=pltpu.PrefetchScalarGridSpec(
            num_scalar_prefetch=0,
            grid=(nm, nk),
            in_specs=[
                pl.BlockSpec((tm, tk), lambda i, k: (i, k)),  # A row/K tile
                pl.BlockSpec((tk, n), lambda i, k: (k, 0)),   # B K tile, full N
            ],
            out_specs=pl.BlockSpec((tm, n), lambda i, k: (i, 0)),
            scratch_shapes=[pltpu.VMEM((tm, n), jnp.float32)],
        ),
        compiler_params=pltpu.CompilerParams(
            dimension_semantics=("parallel", "arbitrary"),
            vmem_limit_bytes=vmem_limit,
        ),
    )(a, b)


def _pad2d(x, rows, cols, dtype):
    x = x.astype(dtype)
    pad_r, pad_c = rows - x.shape[0], cols - x.shape[1]
    if pad_r or pad_c:
        x = jnp.pad(x, ((0, pad_r), (0, pad_c)))
    return x


def _pick_tk(padded_k, tm, tk_max):
    """Largest multiple of tm that divides padded_k and is <= tk_max."""
    tk = tm
    cand = (tk_max // tm) * tm
    while cand > tm:
        if padded_k % cand == 0:
            tk = cand
            break
        cand -= tm
    return tk


def gnn_layer(features, adj, weight, active=True, *,
              tm=256, tk_max=2048, out_dtype=jnp.float32):
    """Pallas implementation of GNNLayer.forward.

    features: (N, in_features)
    adj:      (N, N) dense (row-normalized) adjacency -- dense stand-in for
              the torch.spmm sparse operand.
    weight:   (in_features, out_features)
    """
    n_nodes, f_in = features.shape
    f_in2, f_out = weight.shape
    assert f_in == f_in2, (f_in, f_in2)

    # Padded sizes: node dim -> multiple of tm (row tiles, also the K dim of
    # the adj matmul); feature widths -> multiple of 128 (lane-dense stores).
    n_pad = _round_up(n_nodes, tm)
    f_out_pad = _round_up(f_out, 128)
    tk = _pick_tk(n_pad, tm, tk_max)   # K tile of the adj @ support matmul

    # bf16 inputs; all accumulation happens in f32 inside the kernels.
    feat_p = _pad2d(features, n_pad, f_in, jnp.bfloat16)
    w_p = _pad2d(weight, f_in, f_out_pad, jnp.bfloat16)
    adj_p = _pad2d(adj, n_pad, n_pad, jnp.bfloat16)

    # support = features @ weight   (small matmul, K kept full-extent).
    support = _tiled_matmul(feat_p, w_p, relu=False, tm=tm, tk=f_in,
                            out_dtype=jnp.bfloat16)

    # output = adj @ support (+ fused ReLU).  K (= node dim) is tiled so the
    # adj row tile stays VMEM-bounded for large graphs.
    # TODO(synk): adj is ~90% zeros in SDCN; a block-sparse variant that
    # prefetches per-row-tile nonzero block ids via PrefetchScalarGridSpec
    # would skip most of the N^2 HBM traffic.
    out_p = _tiled_matmul(adj_p, support, relu=bool(active), tm=tm, tk=tk,
                          out_dtype=out_dtype)

    return out_p[:n_nodes, :f_out]


def xavier_uniform(key, shape, dtype=jnp.float32):
    """Matches torch.nn.init.xavier_uniform_ for a 2-D (fan_in, fan_out) weight."""
    fan_in, fan_out = shape
    bound = (6.0 / (fan_in + fan_out)) ** 0.5
    return jax.random.uniform(key, shape, dtype, minval=-bound, maxval=bound)


if __name__ == "__main__":
    N = 300              # deliberately NOT a multiple of the 256-row tile
    IN_FEATURES = 96
    OUT_FEATURES = 32    # < 128, exercises the lane-dense padding path

    key = jax.random.PRNGKey(0)
    k_feat, k_adj, k_w = jax.random.split(key, 3)

    features = jax.random.normal(k_feat, (N, IN_FEATURES), dtype=jnp.float32)

    # Dense row-normalized adjacency (stand-in for the sparse adj in spmm).
    adj_raw = (jax.random.uniform(k_adj, (N, N)) < 0.1).astype(jnp.float32)
    adj_raw = adj_raw + jnp.eye(N, dtype=jnp.float32)         # self loops
    adj = adj_raw / jnp.sum(adj_raw, axis=1, keepdims=True)   # row-normalize

    weight = xavier_uniform(k_w, (IN_FEATURES, OUT_FEATURES))

    # tk_max=256 forces a 2-step K reduction grid here (exercises the
    # accumulator init/finalize path); the default tk_max=2048 would pick a
    # single full-extent K step for a graph this small.
    out = gnn_layer(features, adj, weight, active=True, tk_max=256)
    out = jax.block_until_ready(out)
    assert out.shape == (N, OUT_FEATURES)

    # Tight check vs. a bf16-consistent reference (same casts as the kernel).
    f_bf = features.astype(jnp.bfloat16).astype(jnp.float32)
    w_bf = weight.astype(jnp.bfloat16).astype(jnp.float32)
    a_bf = adj.astype(jnp.bfloat16).astype(jnp.float32)
    support_bf = (f_bf @ w_bf).astype(jnp.bfloat16).astype(jnp.float32)
    ref_bf16 = jnp.maximum(a_bf @ support_bf, 0.0)
    assert jnp.allclose(out, ref_bf16, atol=2e-3, rtol=2e-3), \
        "mismatch vs bf16-consistent reference"

    # Loose check vs. full-f32 torch semantics (bf16 inputs => ~0.5% rel err).
    ref_f32 = jnp.maximum(adj @ (features @ weight), 0.0)
    assert jnp.allclose(out, ref_f32, atol=3e-2, rtol=3e-2), \
        "mismatch vs f32 reference"

    print("KERNEL_OK")
</pallas_src>

<mosaic_0001>
module attributes {stable_mosaic.version = 11 : i64} {
  func.func @_matmul_kernel(%arg0: i32, %arg1: i32, %arg2: memref<256x96xbf16, #tpu.memory_space<vmem>>, %arg3: memref<96x128xbf16, #tpu.memory_space<vmem>>, %arg4: memref<256x128xbf16, #tpu.memory_space<vmem>>, %arg5: memref<256x128xf32, #tpu.memory_space<vmem>>) attributes {dimension_semantics = [#tpu.dimension_semantics<parallel>, #tpu.dimension_semantics<arbitrary>], iteration_bounds = array<i64: 2, 1>, scalar_prefetch = 0 : i64, scratch_operands = 1 : i64, tpu.core_type = #tpu.core_type<tc>, window_params = [{transform_indices = @transform_0, window_bounds = array<i64: 256, 96>}, {transform_indices = @transform_1, window_bounds = array<i64: 96, 128>}, {transform_indices = @transform_2, window_bounds = array<i64: 256, 128>}]} {
    %c0_i32 = arith.constant 0 : i32
    %0 = arith.cmpi eq, %arg1, %c0_i32 : i32
    %1 = arith.extui %0 : i1 to i32
    %c0_i32_0 = arith.constant 0 : i32
    %2 = arith.cmpi ne, %1, %c0_i32_0 : i32
    scf.if %2 {
      %cst_10 = arith.constant 0.000000e+00 : f32
      %12 = vector.broadcast %cst_10 : f32 to vector<256x128xf32>
      %c0_11 = arith.constant 0 : index
      %c0_12 = arith.constant 0 : index
      %13 = vector.load %arg5[%c0_11, %c0_12] : memref<256x128xf32, #tpu.memory_space<vmem>>, vector<256x128xf32>
      tpu.vector_store %arg5[%c0_11, %c0_12], %12 {strides = array<i32>} : memref<256x128xf32, #tpu.memory_space<vmem>>, vector<256x128xf32>,
    } else {
    }
    %c0 = arith.constant 0 : index
    %c0_1 = arith.constant 0 : index
    %3 = vector.load %arg5[%c0, %c0_1] : memref<256x128xf32, #tpu.memory_space<vmem>>, vector<256x128xf32>
    %c0_2 = arith.constant 0 : index
    %c0_3 = arith.constant 0 : index
    %4 = vector.load %arg2[%c0_2, %c0_3] : memref<256x96xbf16, #tpu.memory_space<vmem>>, vector<256x96xbf16>
    %c0_4 = arith.constant 0 : index
    %c0_5 = arith.constant 0 : index
    %5 = vector.load %arg3[%c0_4, %c0_5] : memref<96x128xbf16, #tpu.memory_space<vmem>>, vector<96x128xbf16>
    %cst = arith.constant dense<0.000000e+00> : vector<256x128xf32>
    %6 = tpu.matmul %4, %5, %cst {dimension_numbers = #tpu.dot_dimension_numbers<[1], [0], [0], [1], [0, 0, 1, 1], [], []>} : vector<256x96xbf16>, vector<96x128xbf16>, vector<256x128xf32> -> vector<256x128xf32>
    %7 = arith.addf %3, %6 : vector<256x128xf32>
    %c0_6 = arith.constant 0 : index
    %c0_7 = arith.constant 0 : index
    %8 = vector.load %arg5[%c0_6, %c0_7] : memref<256x128xf32, #tpu.memory_space<vmem>>, vector<256x128xf32>
    tpu.vector_store %arg5[%c0_6, %c0_7], %7 {strides = array<i32>} : memref<256x128xf32, #tpu.memory_space<vmem>>, vector<256x128xf32>,
    %c0_i32_8 = arith.constant 0 : i32
    %9 = arith.cmpi eq, %arg1, %c0_i32_8 : i32
    %10 = arith.extui %9 : i1 to i32
    %c0_i32_9 = arith.constant 0 : i32
    %11 = arith.cmpi ne, %10, %c0_i32_9 : i32
    scf.if %11 {
      %c0_10 = arith.constant 0 : index
      %c0_11 = arith.constant 0 : index
      %12 = vector.load %arg5[%c0_10, %c0_11] : memref<256x128xf32, #tpu.memory_space<vmem>>, vector<256x128xf32>
      %13 = arith.truncf %12 : vector<256x128xf32> to vector<256x128xbf16>
      %c0_12 = arith.constant 0 : index
      %c0_13 = arith.constant 0 : index
      %14 = vector.load %arg4[%c0_12, %c0_13] : memref<256x128xbf16, #tpu.memory_space<vmem>>, vector<256x128xbf16>
      tpu.vector_store %arg4[%c0_12, %c0_13], %13 {strides = array<i32>} : memref<256x128xbf16, #tpu.memory_space<vmem>>, vector<256x128xbf16>,
    } else {
    }
    return
  }
  func.func @transform_0(%arg0: i32, %arg1: i32) -> (i32, i32) {
    %c0_i32 = arith.constant 0 : i32
    return %arg0, %arg1 : i32, i32
  }
  func.func @transform_1(%arg0: i32, %arg1: i32) -> (i32, i32) {
    %c0_i32 = arith.constant 0 : i32
    %c0_i32_0 = arith.constant 0 : i32
    return %arg1, %c0_i32 : i32, i32
  }
  func.func @transform_2(%arg0: i32, %arg1: i32) -> (i32, i32) {
    %c0_i32 = arith.constant 0 : i32
    %c0_i32_0 = arith.constant 0 : i32
    return %arg0, %c0_i32 : i32, i32
  }
}

</mosaic_0001>

<llo_original>
// kernel: tpu_custom_call.1
$region0: #{tpu_custom_call.1}
  #allocation0 [shape = 'u32[]', space=smem, size = 0x4, offset = 0x4, fixed_abs, tag = 'smem constant byte address 0x4 - core index']
  #allocation1 [shape = 'u32[72,128]{1,0:T(1,128)}', space=vmem, size = 0x9000, scoped, tag = 'internal scratch']
  #allocation2 [shape = 'f32[256,128]{1,0:T(8,128)}', space=vmem, size = 0x20000, scoped, tag = 'scratch operand']
  %s0 = inlined_call_operand.vmem [shape: bf16[512,96], index: 0, kind: input, shape index: {}]
  %s1 = inlined_call_operand.vmem [shape: bf16[96,128], index: 1, kind: input, shape index: {}]
  %s2 = inlined_call_operand.hbm [shape: bf16[512,128], index: 2, kind: output, shape index: {}]
  %s3 = sld [smem:[#allocation0]]
  $region49: #{tpu_custom_call.1} parent=0
    _
  %s5 = ssub.s32 1, %s3
  %s6 = scalar_select 0, %s5, %s3
  $region1: #{tpu_custom_call.1} parent=0
    #allocation3 [shape = 'u8[131072]{0}', space=vmem, size = 0x20000, scoped, tag = 'output window, operand 0']
    #allocation4 [shape = 's32[2]{0}', space=sflag, size = 0x8, scoped, tag = 'scoped memory for tpu_custom_call.1']
    %7 = vsyncpa [#allocation4], 0
    %s8 = scalar_lea.sflag [#allocation4], 1
    %9 = vsyncpa %s8, 0
    loop: start=0, step=1, limit=4
    $region2: #{tpu_custom_call.1} parent=1 // loop_pre_header
      _
    $region3: #{tpu_custom_call.1} parent=1 // loop_header
      %s11 = sphi 0, %s15
      %p12 = scmp.ge.s32.totalorder %s11, 4
      %s18 = sphi 0, %s30
      %s19 = sphi 0, %s26
      %s20 = sphi 0, %s18
      %s21 = sphi 0, %s19
      %s22 = sphi 0, %s20
      %s23 = sphi 0, %s21
      %s35 = sphi 0, %s37
      %s38 = sphi 0, %s35
      %s39 = sphi 0, %s38
      %s55 = sphi 0, %s39
      %s61 = sphi 0, %s63
      %s64 = sphi 0, %s61
      %s65 = sphi 0, %s64
      %s81 = sphi 0, %s65
      %s87 = sphi 0, %s89
      %s90 = sphi 0, %s87
      %s91 = sphi 0, %s90
      %s107 = sphi 0, %s91
    $region4: #{tpu_custom_call.1} parent=1 // loop_header_branch
      %14 = sbr.rel (%p12) target = $region8
    $region5: #{tpu_custom_call.1} parent=1 // loop_body
      %s16 = ssub.s32 %s11, 1
      %s17 = ssub.s32 %s11, 2
      %s24 = sadd.s32 1, %s19
      %p25 = scmp.ge.s32.totalorder %s24, 1
      %s26 = scalar_select %p25, 0, %s24
      %s27 = sadd.s32 1, %s18
      %s28 = scalar_select %p25, %s27, %s18
      %p29 = scmp.ge.s32.totalorder %s28, 2
      %s30 = scalar_select %p29, 0, %s28
      %s31 = ssub.s32 %s18, %s30
      %s32 = ssub.s32 %s19, %s26
      %s33 = sor.u32 %s31, %s32
      %p34 = scmp.eq.s32.totalorder %s33, 0
      %s36 = sadd.s32 %s35, 1
      %s37 = scalar_select %p34, %s35, %s36
      %p40 = pneg %p34
      %p41 = scmp.eq.s32.totalorder %s11, 1
      %p42 = por %p40, %p41
      %p43 = scmp.ne.s32.totalorder %s35, %s38
      %p44 = scmp.eq.s32.totalorder %s11, 0
      %p45 = por %p43, %p44
      %p46 = scmp.ne.s32.totalorder %s35, %s38
      %p47 = scmp.eq.s32.totalorder %s16, 1
      %p48 = por %p46, %p47
      %p49 = scmp.ne.s32.totalorder %s38, %s39
      %p50 = scmp.eq.s32.totalorder %s16, 0
      %p51 = por %p49, %p50
      %p52 = scmp.ne.s32.totalorder %s38, %s39
      %p53 = scmp.eq.s32.totalorder %s17, 1
      %p54 = por %p52, %p53
      %p56 = scmp.ne.s32.totalorder %s39, %s55
      %p57 = scmp.eq.s32.totalorder %s17, 0
      %p58 = por %p56, %p57
      %s59 = ssub.s32 %s19, %s26
      %p60 = scmp.eq.s32.totalorder %s59, 0
      %s62 = sadd.s32 %s61, 1
      %s63 = scalar_select %p60, %s61, %s62
      %p66 = pneg %p60
      %p67 = scmp.eq.s32.totalorder %s11, 1
      %p68 = por %p66, %p67
      %p69 = scmp.ne.s32.totalorder %s61, %s64
      %p70 = scmp.eq.s32.totalorder %s11, 0
      %p71 = por %p69, %p70
      %p72 = scmp.ne.s32.totalorder %s61, %s64
      %p73 = scmp.eq.s32.totalorder %s16, 1
      %p74 = por %p72, %p73
      %p75 = scmp.ne.s32.totalorder %s64, %s65
      %p76 = scmp.eq.s32.totalorder %s16, 0
      %p77 = por %p75, %p76
      %p78 = scmp.ne.s32.totalorder %s64, %s65
      %p79 = scmp.eq.s32.totalorder %s17, 1
      %p80 = por %p78, %p79
      %p82 = scmp.ne.s32.totalorder %s65, %s81
      %p83 = scmp.eq.s32.totalorder %s17, 0
      %p84 = por %p82, %p83
      %s85 = ssub.s32 %s18, %s30
      %p86 = scmp.eq.s32.totalorder %s85, 0
      %s88 = sadd.s32 %s87, 1
      %s89 = scalar_select %p86, %s87, %s88
      %p92 = pneg %p86
      %p93 = scmp.eq.s32.totalorder %s11, 1
      %p94 = por %p92, %p93
      %p95 = scmp.ne.s32.totalorder %s87, %s90
      %p96 = scmp.eq.s32.totalorder %s11, 0
      %p97 = por %p95, %p96
      %p98 = scmp.ne.s32.totalorder %s87, %s90
      %p99 = scmp.eq.s32.totalorder %s16, 1
      %p100 = por %p98, %p99
      %p101 = scmp.ne.s32.totalorder %s90, %s91
      %p102 = scmp.eq.s32.totalorder %s16, 0
      %p103 = por %p101, %p102
      %p104 = scmp.ne.s32.totalorder %s90, %s91
      %p105 = scmp.eq.s32.totalorder %s17, 1
      %p106 = por %p104, %p105
      %p108 = scmp.ne.s32.totalorder %s91, %s107
      %p109 = scmp.eq.s32.totalorder %s17, 0
      %p110 = por %p108, %p109
      %p111 = scmp.le.s32.totalorder 1, %s11
      %p112 = scmp.lt.s32.totalorder %s11, 3
      %p113 = pnand %p111, %p112
      %p114 = pneg %p113
      // Predicated region
      $region9: #{tpu_custom_call.1} parent=5 // pred_check
        _
      $region10: #{tpu_custom_call.1} parent=5 // pred_check_branch
        %116 = sbr.rel (%p113) target = $region12
      $region11: #{tpu_custom_call.1} parent=5 // pred_region
        %s117 = ssub.s32 %s11, 1
        // Predicated region
        $region13: #{tpu_custom_call.1} parent=11 // pred_check
          %p118 = pneg %p77
        $region14: #{tpu_custom_call.1} parent=11 // pred_check_branch
          %120 = sbr.rel (%p118) target = $region16
        $region15: #{tpu_custom_call.1} parent=11 // pred_region
          %s121 = smul.u32 12, %s21
          %p122 = scmp.lt.s32.totalorder %s121, 11
          %s123 = scalar_select %p122, %s121, 11
          %s124 = smul.addr %s123, 4
          %s125 = scalar_lea.vmem %s1, %s124
          %s126 = smul.u32 12, %s21
        $region16: #{tpu_custom_call.1} parent=11 // pred_fallthru
          _
      $region12: #{tpu_custom_call.1} parent=5 // pred_fallthru
        _
      %p127 = scmp.lt.s32.totalorder %s11, 2
      // Predicated region
      $region17: #{tpu_custom_call.1} parent=5 // pred_check
        %p128 = pneg %p127
      $region18: #{tpu_custom_call.1} parent=5 // pred_check_branch
        %130 = sbr.rel (%p128) target = $region20
      $region19: #{tpu_custom_call.1} parent=5 // pred_region
        // Predicated region
        $region21: #{tpu_custom_call.1} parent=19 // pred_check
          %p131 = pneg %p45
        $region22: #{tpu_custom_call.1} parent=19 // pred_check_branch
          %133 = sbr.rel (%p131) target = $region24
        $region23: #{tpu_custom_call.1} parent=19 // pred_region
          %s134 = smul.u32 32, %s18
          %p135 = scmp.lt.s32.totalorder %s134, 63
          %s136 = scalar_select %p135, %s134, 63
          %p137 = scmp.lt.s32.totalorder %s19, 0
          %s138 = scalar_select %p137, %s19, 0
          %s139 = sadd.s32 %s138, %s136
          %s140 = smul.addr %s139, 4
          %s141 = scalar_lea.vmem %s0, %s140
          %s142 = smul.u32 32, %s18
        $region24: #{tpu_custom_call.1} parent=19 // pred_fallthru
          _
      $region20: #{tpu_custom_call.1} parent=5 // pred_fallthru
        _
      %p143 = scmp.le.s32.totalorder 1, %s11
      %p144 = scmp.lt.s32.totalorder %s11, 3
      %p145 = pnand %p143, %p144
      %p146 = pneg %p145
      // Predicated region
      $region25: #{tpu_custom_call.1} parent=5 // pred_check
        _
      $region26: #{tpu_custom_call.1} parent=5 // pred_check_branch
        %148 = sbr.rel (%p145) target = $region28
      $region27: #{tpu_custom_call.1} parent=5 // pred_region
        %s149 = ssub.s32 %s11, 1
        %s150 = smul.u32 32, %s20
        %p151 = scmp.lt.s32.totalorder %s150, 63
        %s152 = scalar_select %p151, %s150, 63
        %p153 = scmp.lt.s32.totalorder %s21, 0
        %s154 = scalar_select %p153, %s21, 0
        %s155 = sadd.s32 %s154, %s152
        %s156 = smul.addr %s155, 4
        %s157 = scalar_lea.vmem %s0, %s156
        %p158 = pneg %p51
        %p159 = pneg %p48
        %s160 = smul.u32 12, %s21
        %p161 = scmp.lt.s32.totalorder %s160, 11
        %s162 = scalar_select %p161, %s160, 11
        %s163 = smul.addr %s162, 4
        %s164 = scalar_lea.vmem %s1, %s163
        %p165 = pneg %p77
        %p166 = pneg %p74
        %p167 = pneg %p103
        %p168 = pneg %p100
        %s169 = sand.u32 %s90, 1
        %s170 = scalar_lea.sflag [#allocation4], %s169
        %s171 = sand.u32 %s90, 1
        %s172 = smul.addr %s171, 128
        %s173 = scalar_lea.vmem [#allocation3], %s172
        %s174 = smul.u32 32, %s20
        %p175 = scmp.lt.s32.totalorder %s174, 63
        %s176 = scalar_select %p175, %s174, 63
        %p177 = scmp.lt.s32.totalorder %s21, 0
        %s178 = scalar_select %p177, %s21, 0
        %s179 = sadd.s32 %s178, %s176
        %s180 = smul.addr %s179, 4
        %s181 = scalar_lea.vmem %s0, %s180
        %s182 = smul.u32 32, %s20
        %s183 = smul.u32 12, %s21
        %p184 = scmp.lt.s32.totalorder %s183, 11
        %s185 = scalar_select %p184, %s183, 11
        %s186 = smul.addr %s185, 4
        %s187 = scalar_lea.vmem %s1, %s186
        %s188 = smul.u32 12, %s21
        %s189 = smul.u32 32, %s20
        %p191 = scmp.eq.s32.totalorder %s21, 0
        // Predicated region
        $region29: #{tpu_custom_call.1} parent=27 // pred_check
          %p192 = pneg %p191
        $region30: #{tpu_custom_call.1} parent=27 // pred_check_branch
          %194 = sbr.rel (%p192) target = $region32
        $region31: #{tpu_custom_call.1} parent=27 // pred_region
          %195 = vst [vmem:[#allocation2] sm:$0xff] 0.0
          %196 = vst [vmem:[#allocation2 + $0x8] sm:$0xff] 0.0
          %197 = vst [vmem:[#allocation2 + $0x10] sm:$0xff] 0.0
          %198 = vst [vmem:[#allocation2 + $0x18] sm:$0xff] 0.0
          %199 = vst [vmem:[#allocation2 + $0x20] sm:$0xff] 0.0
          %200 = vst [vmem:[#allocation2 + $0x28] sm:$0xff] 0.0
          %201 = vst [vmem:[#allocation2 + $0x30] sm:$0xff] 0.0
          %202 = vst [vmem:[#allocation2 + $0x38] sm:$0xff] 0.0
          %203 = vst [vmem:[#allocation2 + $0x40] sm:$0xff] 0.0
          %204 = vst [vmem:[#allocation2 + $0x48] sm:$0xff] 0.0
          %205 = vst [vmem:[#allocation2 + $0x50] sm:$0xff] 0.0
          %206 = vst [vmem:[#allocation2 + $0x58] sm:$0xff] 0.0
          %207 = vst [vmem:[#allocation2 + $0x60] sm:$0xff] 0.0
          %208 = vst [vmem:[#allocation2 + $0x68] sm:$0xff] 0.0
          %209 = vst [vmem:[#allocation2 + $0x70] sm:$0xff] 0.0
          %210 = vst [vmem:[#allocation2 + $0x78] sm:$0xff] 0.0
          %211 = vst [vmem:[#allocation2 + $0x80] sm:$0xff] 0.0
          %212 = vst [vmem:[#allocation2 + $0x88] sm:$0xff] 0.0
          %213 = vst [vmem:[#allocation2 + $0x90] sm:$0xff] 0.0
          %214 = vst [vmem:[#allocation2 + $0x98] sm:$0xff] 0.0
          %215 = vst [vmem:[#allocation2 + $0xa0] sm:$0xff] 0.0
          %216 = vst [vmem:[#allocation2 + $0xa8] sm:$0xff] 0.0
          %217 = vst [vmem:[#allocation2 + $0xb0] sm:$0xff] 0.0
          %218 = vst [vmem:[#allocation2 + $0xb8] sm:$0xff] 0.0
          %219 = vst [vmem:[#allocation2 + $0xc0] sm:$0xff] 0.0
          %220 = vst [vmem:[#allocation2 + $0xc8] sm:$0xff] 0.0
          %221 = vst [vmem:[#allocation2 + $0xd0] sm:$0xff] 0.0
          %222 = vst [vmem:[#allocation2 + $0xd8] sm:$0xff] 0.0
          %223 = vst [vmem:[#allocation2 + $0xe0] sm:$0xff] 0.0
          %224 = vst [vmem:[#allocation2 + $0xe8] sm:$0xff] 0.0
          %225 = vst [vmem:[#allocation2 + $0xf0] sm:$0xff] 0.0
          %226 = vst [vmem:[#allocation2 + $0xf8] sm:$0xff] 0.0
        $region32: #{tpu_custom_call.1} parent=27 // pred_fallthru
          _
        %v227 = vld [vmem:[#allocation2] sm:$0xff]
        %v228 = vld [vmem:[#allocation2 + $0x8] sm:$0xff]
        %v229 = vld [vmem:[#allocation2 + $0x10] sm:$0xff]
        %v230 = vld [vmem:[#allocation2 + $0x18] sm:$0xff]
        %v231 = vld [vmem:[#allocation2 + $0x20] sm:$0xff]
        %v232 = vld [vmem:[#allocation2 + $0x28] sm:$0xff]
        %v233 = vld [vmem:[#allocation2 + $0x30] sm:$0xff]
        %v234 = vld [vmem:[#allocation2 + $0x38] sm:$0xff]
        %v235 = vld [vmem:[#allocation2 + $0x40] sm:$0xff]
        %v236 = vld [vmem:[#allocation2 + $0x48] sm:$0xff]
        %v237 = vld [vmem:[#allocation2 + $0x50] sm:$0xff]
        %v238 = vld [vmem:[#allocation2 + $0x58] sm:$0xff]
        %v239 = vld [vmem:[#allocation2 + $0x60] sm:$0xff]
        %v240 = vld [vmem:[#allocation2 + $0x68] sm:$0xff]
        %v241 = vld [vmem:[#allocation2 + $0x70] sm:$0xff]
        %v242 = vld [vmem:[#allocation2 + $0x78] sm:$0xff]
        %v243 = vld [vmem:[#allocation2 + $0x80] sm:$0xff]
        %v244 = vld [vmem:[#allocation2 + $0x88] sm:$0xff]
        %v245 = vld [vmem:[#allocation2 + $0x90] sm:$0xff]
        %v246 = vld [vmem:[#allocation2 + $0x98] sm:$0xff]
        %v247 = vld [vmem:[#allocation2 + $0xa0] sm:$0xff]
        %v248 = vld [vmem:[#allocation2 + $0xa8] sm:$0xff]
        %v249 = vld [vmem:[#allocation2 + $0xb0] sm:$0xff]
        %v250 = vld [vmem:[#allocation2 + $0xb8] sm:$0xff]
        %v251 = vld [vmem:[#allocation2 + $0xc0] sm:$0xff]
        %v252 = vld [vmem:[#allocation2 + $0xc8] sm:$0xff]
        %v253 = vld [vmem:[#allocation2 + $0xd0] sm:$0xff]
        %v254 = vld [vmem:[#allocation2 + $0xd8] sm:$0xff]
        %v255 = vld [vmem:[#allocation2 + $0xe0] sm:$0xff]
        %v256 = vld [vmem:[#allocation2 + $0xe8] sm:$0xff]
        %v257 = vld [vmem:[#allocation2 + $0xf0] sm:$0xff]
        %v258 = vld [vmem:[#allocation2 + $0xf8] sm:$0xff]
        %v259 = vld [vmem:[%s181] sm:$0xf]
        %v260 = vld [vmem:[%s181 + $0x4] sm:$0xf]
        %v261 = vld [vmem:[%s181 + $0x8] sm:$0xf]
        %v262 = vld [vmem:[%s181 + $0xc] sm:$0xf]
        %v263 = vld [vmem:[%s181 + $0x10] sm:$0xf]
        %v264 = vld [vmem:[%s181 + $0x14] sm:$0xf]
        %v265 = vld [vmem:[%s181 + $0x18] sm:$0xf]
        %v266 = vld [vmem:[%s181 + $0x1c] sm:$0xf]
        %v267 = vld [vmem:[%s181 + $0x20] sm:$0xf]
        %v268 = vld [vmem:[%s181 + $0x24] sm:$0xf]
        %v269 = vld [vmem:[%s181 + $0x28] sm:$0xf]
        %v270 = vld [vmem:[%s181 + $0x2c] sm:$0xf]
        %v271 = vld [vmem:[%s181 + $0x30] sm:$0xf]
        %v272 = vld [vmem:[%s181 + $0x34] sm:$0xf]
        %v273 = vld [vmem:[%s181 + $0x38] sm:$0xf]
        %v274 = vld [vmem:[%s181 + $0x3c] sm:$0xf]
        %v275 = vld [vmem:[%s181 + $0x40] sm:$0xf]
        %v276 = vld [vmem:[%s181 + $0x44] sm:$0xf]
        %v277 = vld [vmem:[%s181 + $0x48] sm:$0xf]
        %v278 = vld [vmem:[%s181 + $0x4c] sm:$0xf]
        %v279 = vld [vmem:[%s181 + $0x50] sm:$0xf]
        %v280 = vld [vmem:[%s181 + $0x54] sm:$0xf]
        %v281 = vld [vmem:[%s181 + $0x58] sm:$0xf]
        %v282 = vld [vmem:[%s181 + $0x5c] sm:$0xf]
        %v283 = vld [vmem:[%s181 + $0x60] sm:$0xf]
        %v284 = vld [vmem:[%s181 + $0x64] sm:$0xf]
        %v285 = vld [vmem:[%s181 + $0x68] sm:$0xf]
        %v286 = vld [vmem:[%s181 + $0x6c] sm:$0xf]
        %v287 = vld [vmem:[%s181 + $0x70] sm:$0xf]
        %v288 = vld [vmem:[%s181 + $0x74] sm:$0xf]
        %v289 = vld [vmem:[%s181 + $0x78] sm:$0xf]
        %v290 = vld [vmem:[%s181 + $0x7c] sm:$0xf]
        %v291 = vld [vmem:[%s187] sm:$0xf]
        %v292 = vld [vmem:[%s187 + $0x4] sm:$0xf]
        %v293 = vld [vmem:[%s187 + $0x8] sm:$0xf]
        %v294 = vld [vmem:[%s187 + $0xc] sm:$0xf]
        %v295 = vld [vmem:[%s187 + $0x10] sm:$0xf]
        %v296 = vld [vmem:[%s187 + $0x14] sm:$0xf]
        %v297 = vld [vmem:[%s187 + $0x18] sm:$0xf]
        %v298 = vld [vmem:[%s187 + $0x1c] sm:$0xf]
        %v299 = vld [vmem:[%s187 + $0x20] sm:$0xf]
        %v300 = vld [vmem:[%s187 + $0x24] sm:$0xf]
        %v301 = vld [vmem:[%s187 + $0x28] sm:$0xf]
        %v302 = vld [vmem:[%s187 + $0x2c] sm:$0xf]
        %v335 = vunpack.c.l.b16 %v259
        %v336 = vunpack.c.l.b16 %v260
        %v337 = vunpack.c.l.b16 %v261
        %v338 = vunpack.c.l.b16 %v262
        %v339 = vunpack.c.l.b16 %v263
        %v340 = vunpack.c.l.b16 %v264
        %v341 = vunpack.c.l.b16 %v265
        %v342 = vunpack.c.l.b16 %v266
        %v343 = vunpack.c.l.b16 %v267
        %v344 = vunpack.c.l.b16 %v268
        %v345 = vunpack.c.l.b16 %v269
        %v346 = vunpack.c.l.b16 %v270
        %v347 = vunpack.c.l.b16 %v271
        %v348 = vunpack.c.l.b16 %v272
        %v349 = vunpack.c.l.b16 %v273
        %v350 = vunpack.c.l.b16 %v274
        %v351 = vunpack.c.l.b16 %v275
        %v352 = vunpack.c.l.b16 %v276
        %v353 = vunpack.c.l.b16 %v277
        %v354 = vunpack.c.l.b16 %v278
        %v355 = vunpack.c.l.b16 %v279
        %v356 = vunpack.c.l.b16 %v280
        %v357 = vunpack.c.l.b16 %v281
        %v358 = vunpack.c.l.b16 %v282
        %v359 = vunpack.c.l.b16 %v283
        %v360 = vunpack.c.l.b16 %v284
        %v361 = vunpack.c.l.b16 %v285
        %v362 = vunpack.c.l.b16 %v286
        %v363 = vunpack.c.l.b16 %v287
        %v364 = vunpack.c.l.b16 %v288
        %v365 = vunpack.c.l.b16 %v289
        %v366 = vunpack.c.l.b16 %v290
        %v367 = vpack.c.b16 %v336, %v335
        %v368 = vpack.c.b16 %v338, %v337
        %v369 = vpack.c.b16 %v340, %v339
        %v370 = vpack.c.b16 %v342, %v341
        %v371 = vpack.c.b16 %v344, %v343
        %v372 = vpack.c.b16 %v346, %v345
        %v373 = vpack.c.b16 %v348, %v347
        %v374 = vpack.c.b16 %v350, %v349
        %v375 = vpack.c.b16 %v352, %v351
        %v376 = vpack.c.b16 %v354, %v353
        %v377 = vpack.c.b16 %v356, %v355
        %v378 = vpack.c.b16 %v358, %v357
        %v379 = vpack.c.b16 %v360, %v359
        %v380 = vpack.c.b16 %v362, %v361
        %v381 = vpack.c.b16 %v364, %v363
        %v382 = vpack.c.b16 %v366, %v365
        %v395 = vunpack.c.l.b16 %v291
        %v396 = vunpack.c.l.b16 %v292
        %v397 = vunpack.c.l.b16 %v293
        %v398 = vunpack.c.l.b16 %v294
        %v399 = vunpack.c.l.b16 %v295
        %v400 = vunpack.c.l.b16 %v296
        %v401 = vunpack.c.l.b16 %v297
        %v402 = vunpack.c.l.b16 %v298
        %v403 = vunpack.c.l.b16 %v299
        %v404 = vunpack.c.l.b16 %v300
        %v405 = vunpack.c.l.b16 %v301
        %v406 = vunpack.c.l.b16 %v302
        %v407 = vpack.c.b16 %v396, %v395
        %v408 = vpack.c.b16 %v398, %v397
        %v409 = vpack.c.b16 %v400, %v399
        %v410 = vpack.c.b16 %v402, %v401
        %v411 = vpack.c.b16 %v404, %v403
        %v412 = vpack.c.b16 %v406, %v405
        %vm419 = vcmask 785408
        %v421 = vsel %vm419, %v367, 0
        %v424 = vsel %vm419, %v368, 0
        %v427 = vsel %vm419, %v369, 0
        %v430 = vsel %vm419, %v370, 0
        %v433 = vsel %vm419, %v371, 0
        %v436 = vsel %vm419, %v372, 0
        %v439 = vsel %vm419, %v373, 0
        %v442 = vsel %vm419, %v374, 0
        %v445 = vsel %vm419, %v375, 0
        %v448 = vsel %vm419, %v376, 0
        %v451 = vsel %vm419, %v377, 0
        %v454 = vsel %vm419, %v378, 0
        %v457 = vsel %vm419, %v379, 0
        %v460 = vsel %vm419, %v380, 0
        %v463 = vsel %vm419, %v381, 0
        %v466 = vsel %vm419, %v382, 0
        %468 = vmatpush.bf16.msra.mxu0 0
        %469 = vmatpush.bf16.msra.mxu0 0
        %470 = vmatpush.bf16.msra.mxu0 %v412
        %471 = vmatpush.bf16.msra.mxu0 %v411
        %472 = vmatpush.bf16.msra.mxu0 %v410
        %473 = vmatpush.bf16.msra.mxu0 %v409
        %474 = vmatpush.bf16.msra.mxu0 %v408
        %475 = vmatpush.bf16.msra.mxu0 %v407
        %476 = vmatmul.bf16.gmra.mxu0 %v421
        %v477 = vpop.f32.mrf.mxu0
        %v478 = vadd.f32 0.0, %v477
        %v479 = vpop.f32.mrf.mxu0
        %v480 = vadd.f32 0.0, %v479
        %481 = vmatmul.bf16.gmra.mxu0 %v424
        %v482 = vpop.f32.mrf.mxu0
        %v483 = vadd.f32 0.0, %v482
        %v484 = vpop.f32.mrf.mxu0
        %v485 = vadd.f32 0.0, %v484
        %486 = vmatmul.bf16.gmra.mxu0 %v427
        %v487 = vpop.f32.mrf.mxu0
        %v488 = vadd.f32 0.0, %v487
        %v489 = vpop.f32.mrf.mxu0
        %v490 = vadd.f32 0.0, %v489
        %491 = vmatmul.bf16.gmra.mxu0 %v430
        %v492 = vpop.f32.mrf.mxu0
        %v493 = vadd.f32 0.0, %v492
        %v494 = vpop.f32.mrf.mxu0
        %v495 = vadd.f32 0.0, %v494
        %496 = vmatmul.bf16.gmra.mxu0 %v433
        %v497 = vpop.f32.mrf.mxu0
        %v498 = vadd.f32 0.0, %v497
        %v499 = vpop.f32.mrf.mxu0
        %v500 = vadd.f32 0.0, %v499
        %501 = vmatmul.bf16.gmra.mxu0 %v436
        %v502 = vpop.f32.mrf.mxu0
        %v503 = vadd.f32 0.0, %v502
        %v504 = vpop.f32.mrf.mxu0
        %v505 = vadd.f32 0.0, %v504
        %506 = vmatmul.bf16.gmra.mxu0 %v439
        %v507 = vpop.f32.mrf.mxu0
        %v508 = vadd.f32 0.0, %v507
        %v509 = vpop.f32.mrf.mxu0
        %v510 = vadd.f32 0.0, %v509
        %511 = vmatmul.bf16.gmra.mxu0 %v442
        %v512 = vpop.f32.mrf.mxu0
        %v513 = vadd.f32 0.0, %v512
        %v514 = vpop.f32.mrf.mxu0
        %v515 = vadd.f32 0.0, %v514
        %516 = vmatmul.bf16.gmra.mxu0 %v445
        %v517 = vpop.f32.mrf.mxu0
        %v518 = vadd.f32 0.0, %v517
        %v519 = vpop.f32.mrf.mxu0
        %v520 = vadd.f32 0.0, %v519
        %521 = vmatmul.bf16.gmra.mxu0 %v448
        %v522 = vpop.f32.mrf.mxu0
        %v523 = vadd.f32 0.0, %v522
        %v524 = vpop.f32.mrf.mxu0
        %v525 = vadd.f32 0.0, %v524
        %526 = vmatmul.bf16.gmra.mxu0 %v451
        %v527 = vpop.f32.mrf.mxu0
        %v528 = vadd.f32 0.0, %v527
        %v529 = vpop.f32.mrf.mxu0
        %v530 = vadd.f32 0.0, %v529
        %531 = vmatmul.bf16.gmra.mxu0 %v454
        %v532 = vpop.f32.mrf.mxu0
        %v533 = vadd.f32 0.0, %v532
        %v534 = vpop.f32.mrf.mxu0
        %v535 = vadd.f32 0.0, %v534
        %536 = vmatmul.bf16.gmra.mxu0 %v457
        %v537 = vpop.f32.mrf.mxu0
        %v538 = vadd.f32 0.0, %v537
        %v539 = vpop.f32.mrf.mxu0
        %v540 = vadd.f32 0.0, %v539
        %541 = vmatmul.bf16.gmra.mxu0 %v460
        %v542 = vpop.f32.mrf.mxu0
        %v543 = vadd.f32 0.0, %v542
        %v544 = vpop.f32.mrf.mxu0
        %v545 = vadd.f32 0.0, %v544
        %546 = vmatmul.bf16.gmra.mxu0 %v463
        %v547 = vpop.f32.mrf.mxu0
        %v548 = vadd.f32 0.0, %v547
        %v549 = vpop.f32.mrf.mxu0
        %v550 = vadd.f32 0.0, %v549
        %551 = vmatmul.bf16.gmra.mxu0 %v466
        %v552 = vpop.f32.mrf.mxu0
        %v553 = vadd.f32 0.0, %v552
        %v554 = vpop.f32.mrf.mxu0
        %v555 = vadd.f32 0.0, %v554
        %556 = vdwg.mxu0
        %v557 = vadd.f32 %v227, %v478
        %v558 = vadd.f32 %v228, %v480
        %v559 = vadd.f32 %v229, %v483
        %v560 = vadd.f32 %v230, %v485
        %v561 = vadd.f32 %v231, %v488
        %v562 = vadd.f32 %v232, %v490
        %v563 = vadd.f32 %v233, %v493
        %v564 = vadd.f32 %v234, %v495
        %v565 = vadd.f32 %v235, %v498
        %v566 = vadd.f32 %v236, %v500
        %v567 = vadd.f32 %v237, %v503
        %v568 = vadd.f32 %v238, %v505
        %v569 = vadd.f32 %v239, %v508
        %v570 = vadd.f32 %v240, %v510
        %v571 = vadd.f32 %v241, %v513
        %v572 = vadd.f32 %v242, %v515
        %v573 = vadd.f32 %v243, %v518
        %v574 = vadd.f32 %v244, %v520
        %v575 = vadd.f32 %v245, %v523
        %v576 = vadd.f32 %v246, %v525
        %v577 = vadd.f32 %v247, %v528
        %v578 = vadd.f32 %v248, %v530
        %v579 = vadd.f32 %v249, %v533
        %v580 = vadd.f32 %v250, %v535
        %v581 = vadd.f32 %v251, %v538
        %v582 = vadd.f32 %v252, %v540
        %v583 = vadd.f32 %v253, %v543
        %v584 = vadd.f32 %v254, %v545
        %v585 = vadd.f32 %v255, %v548
        %v586 = vadd.f32 %v256, %v550
        %v587 = vadd.f32 %v257, %v553
        %v588 = vadd.f32 %v258, %v555
        %589 = vst [vmem:[#allocation2] sm:$0xff] %v557
        %590 = vst [vmem:[#allocation2 + $0x8] sm:$0xff] %v558
        %591 = vst [vmem:[#allocation2 + $0x10] sm:$0xff] %v559
        %592 = vst [vmem:[#allocation2 + $0x18] sm:$0xff] %v560
        %593 = vst [vmem:[#allocation2 + $0x20] sm:$0xff] %v561
        %594 = vst [vmem:[#allocation2 + $0x28] sm:$0xff] %v562
        %595 = vst [vmem:[#allocation2 + $0x30] sm:$0xff] %v563
        %596 = vst [vmem:[#allocation2 + $0x38] sm:$0xff] %v564
        %597 = vst [vmem:[#allocation2 + $0x40] sm:$0xff] %v565
        %598 = vst [vmem:[#allocation2 + $0x48] sm:$0xff] %v566
        %599 = vst [vmem:[#allocation2 + $0x50] sm:$0xff] %v567
        %600 = vst [vmem:[#allocation2 + $0x58] sm:$0xff] %v568
        %601 = vst [vmem:[#allocation2 + $0x60] sm:$0xff] %v569
        %602 = vst [vmem:[#allocation2 + $0x68] sm:$0xff] %v570
        %603 = vst [vmem:[#allocation2 + $0x70] sm:$0xff] %v571
        %604 = vst [vmem:[#allocation2 + $0x78] sm:$0xff] %v572
        %605 = vst [vmem:[#allocation2 + $0x80] sm:$0xff] %v573
        %606 = vst [vmem:[#allocation2 + $0x88] sm:$0xff] %v574
        %607 = vst [vmem:[#allocation2 + $0x90] sm:$0xff] %v575
        %608 = vst [vmem:[#allocation2 + $0x98] sm:$0xff] %v576
        %609 = vst [vmem:[#allocation2 + $0xa0] sm:$0xff] %v577
        %610 = vst [vmem:[#allocation2 + $0xa8] sm:$0xff] %v578
        %611 = vst [vmem:[#allocation2 + $0xb0] sm:$0xff] %v579
        %612 = vst [vmem:[#allocation2 + $0xb8] sm:$0xff] %v580
        %613 = vst [vmem:[#allocation2 + $0xc0] sm:$0xff] %v581
        %614 = vst [vmem:[#allocation2 + $0xc8] sm:$0xff] %v582
        %615 = vst [vmem:[#allocation2 + $0xd0] sm:$0xff] %v583
        %616 = vst [vmem:[#allocation2 + $0xd8] sm:$0xff] %v584
        %617 = vst [vmem:[#allocation2 + $0xe0] sm:$0xff] %v585
        %618 = vst [vmem:[#allocation2 + $0xe8] sm:$0xff] %v586
        %619 = vst [vmem:[#allocation2 + $0xf0] sm:$0xff] %v587
        %620 = vst [vmem:[#allocation2 + $0xf8] sm:$0xff] %v588
        // Predicated region
        $region33: #{tpu_custom_call.1} parent=27 // pred_check
          %p621 = pneg %p191
        $region34: #{tpu_custom_call.1} parent=27 // pred_check_branch
          %623 = sbr.rel (%p621) target = $region36
        $region35: #{tpu_custom_call.1} parent=27 // pred_region
          %v624 = vld [vmem:[#allocation2] sm:$0xff]
          %v625 = vld [vmem:[#allocation2 + $0x8] sm:$0xff]
          %v626 = vld [vmem:[#allocation2 + $0x10] sm:$0xff]
          %v627 = vld [vmem:[#allocation2 + $0x18] sm:$0xff]
          %v628 = vld [vmem:[#allocation2 + $0x20] sm:$0xff]
          %v629 = vld [vmem:[#allocation2 + $0x28] sm:$0xff]
          %v630 = vld [vmem:[#allocation2 + $0x30] sm:$0xff]
          %v631 = vld [vmem:[#allocation2 + $0x38] sm:$0xff]
          %v632 = vld [vmem:[#allocation2 + $0x40] sm:$0xff]
          %v633 = vld [vmem:[#allocation2 + $0x48] sm:$0xff]
          %v634 = vld [vmem:[#allocation2 + $0x50] sm:$0xff]
          %v635 = vld [vmem:[#allocation2 + $0x58] sm:$0xff]
          %v636 = vld [vmem:[#allocation2 + $0x60] sm:$0xff]
          %v637 = vld [vmem:[#allocation2 + $0x68] sm:$0xff]
          %v638 = vld [vmem:[#allocation2 + $0x70] sm:$0xff]
          %v639 = vld [vmem:[#allocation2 + $0x78] sm:$0xff]
          %v640 = vld [vmem:[#allocation2 + $0x80] sm:$0xff]
          %v641 = vld [vmem:[#allocation2 + $0x88] sm:$0xff]
          %v642 = vld [vmem:[#allocation2 + $0x90] sm:$0xff]
          %v643 = vld [vmem:[#allocation2 + $0x98] sm:$0xff]
          %v644 = vld [vmem:[#allocation2 + $0xa0] sm:$0xff]
          %v645 = vld [vmem:[#allocation2 + $0xa8] sm:$0xff]
          %v646 = vld [vmem:[#allocation2 + $0xb0] sm:$0xff]
          %v647 = vld [vmem:[#allocation2 + $0xb8] sm:$0xff]
          %v648 = vld [vmem:[#allocation2 + $0xc0] sm:$0xff]
          %v649 = vld [vmem:[#allocation2 + $0xc8] sm:$0xff]
          %v650 = vld [vmem:[#allocation2 + $0xd0] sm:$0xff]
          %v651 = vld [vmem:[#allocation2 + $0xd8] sm:$0xff]
          %v652 = vld [vmem:[#allocation2 + $0xe0] sm:$0xff]
          %v653 = vld [vmem:[#allocation2 + $0xe8] sm:$0xff]
          %v654 = vld [vmem:[#allocation2 + $0xf0] sm:$0xff]
          %v655 = vld [vmem:[#allocation2 + $0xf8] sm:$0xff]
          %v656 = vpack.c.bf16 %v624, %v624
          %v657 = vpack.c.bf16 %v625, %v625
          %v658 = vpack.c.bf16 %v626, %v626
          %v659 = vpack.c.bf16 %v627, %v627
          %v660 = vpack.c.bf16 %v628, %v628
          %v661 = vpack.c.bf16 %v629, %v629
          %v662 = vpack.c.bf16 %v630, %v630
          %v663 = vpack.c.bf16 %v631, %v631
          %v664 = vpack.c.bf16 %v632, %v632
          %v665 = vpack.c.bf16 %v633, %v633
          %v666 = vpack.c.bf16 %v634, %v634
          %v667 = vpack.c.bf16 %v635, %v635
          %v668 = vpack.c.bf16 %v636, %v636
          %v669 = vpack.c.bf16 %v637, %v637
          %v670 = vpack.c.bf16 %v638, %v638
          %v671 = vpack.c.bf16 %v639, %v639
          %v672 = vpack.c.bf16 %v640, %v640
          %v673 = vpack.c.bf16 %v641, %v641
          %v674 = vpack.c.bf16 %v642, %v642
          %v675 = vpack.c.bf16 %v643, %v643
          %v676 = vpack.c.bf16 %v644, %v644
          %v677 = vpack.c.bf16 %v645, %v645
          %v678 = vpack.c.bf16 %v646, %v646
          %v679 = vpack.c.bf16 %v647, %v647
          %v680 = vpack.c.bf16 %v648, %v648
          %v681 = vpack.c.bf16 %v649, %v649
          %v682 = vpack.c.bf16 %v650, %v650
          %v683 = vpack.c.bf16 %v651, %v651
          %v684 = vpack.c.bf16 %v652, %v652
          %v685 = vpack.c.bf16 %v653, %v653
          %v686 = vpack.c.bf16 %v654, %v654
          %v687 = vpack.c.bf16 %v655, %v655
          %688 = vst [vmem:[%s173] sm:$0xf] %v656
          %689 = vst [vmem:[%s173 + $0x4] sm:$0xf] %v657
          %690 = vst [vmem:[%s173 + $0x8] sm:$0xf] %v658
          %691 = vst [vmem:[%s173 + $0xc] sm:$0xf] %v659
          %692 = vst [vmem:[%s173 + $0x10] sm:$0xf] %v660
          %693 = vst [vmem:[%s173 + $0x14] sm:$0xf] %v661
          %694 = vst [vmem:[%s173 + $0x18] sm:$0xf] %v662
          %695 = vst [vmem:[%s173 + $0x1c] sm:$0xf] %v663
          %696 = vst [vmem:[%s173 + $0x20] sm:$0xf] %v664
          %697 = vst [vmem:[%s173 + $0x24] sm:$0xf] %v665
          %698 = vst [vmem:[%s173 + $0x28] sm:$0xf] %v666
          %699 = vst [vmem:[%s173 + $0x2c] sm:$0xf] %v667
          %700 = vst [vmem:[%s173 + $0x30] sm:$0xf] %v668
          %701 = vst [vmem:[%s173 + $0x34] sm:$0xf] %v669
          %702 = vst [vmem:[%s173 + $0x38] sm:$0xf] %v670
          %703 = vst [vmem:[%s173 + $0x3c] sm:$0xf] %v671
          %704 = vst [vmem:[%s173 + $0x40] sm:$0xf] %v672
          %705 = vst [vmem:[%s173 + $0x44] sm:$0xf] %v673
          %706 = vst [vmem:[%s173 + $0x48] sm:$0xf] %v674
          %707 = vst [vmem:[%s173 + $0x4c] sm:$0xf] %v675
          %708 = vst [vmem:[%s173 + $0x50] sm:$0xf] %v676
          %709 = vst [vmem:[%s173 + $0x54] sm:$0xf] %v677
          %710 = vst [vmem:[%s173 + $0x58] sm:$0xf] %v678
          %711 = vst [vmem:[%s173 + $0x5c] sm:$0xf] %v679
          %712 = vst [vmem:[%s173 + $0x60] sm:$0xf] %v680
          %713 = vst [vmem:[%s173 + $0x64] sm:$0xf] %v681
          %714 = vst [vmem:[%s173 + $0x68] sm:$0xf] %v682
          %715 = vst [vmem:[%s173 + $0x6c] sm:$0xf] %v683
          %716 = vst [vmem:[%s173 + $0x70] sm:$0xf] %v684
          %717 = vst [vmem:[%s173 + $0x74] sm:$0xf] %v685
          %718 = vst [vmem:[%s173 + $0x78] sm:$0xf] %v686
          %719 = vst [vmem:[%s173 + $0x7c] sm:$0xf] %v687
        $region36: #{tpu_custom_call.1} parent=27 // pred_fallthru
          _
        %s720 = sand.u32 %s90, 1
        %s721 = scalar_lea.sflag [#allocation4], %s720
        %s722 = sand.u32 %s90, 1
        %s723 = smul.addr %s722, 128
        %s724 = scalar_lea.vmem [#allocation3], %s723
        // Predicated region
        $region37: #{tpu_custom_call.1} parent=27 // pred_check
          %p725 = pneg %p100
        $region38: #{tpu_custom_call.1} parent=27 // pred_check_branch
          %727 = sbr.rel (%p725) target = $region40
        $region39: #{tpu_custom_call.1} parent=27 // pred_region
          %s728 = smul.u32 32, %s20
          %730 = vsyncadd %s721, 0
          %s731 = smul.addr %s728, 4
          %s732 = scalar_lea.hbm %s2, %s731
          %s733 = sshll.u32 %s724, 4
          %s734 = int_to_ptr.vmem [resolvable:$true] %s733
          %s735 = sshll.u32 %s732, 4
          %s736 = int_to_ptr.hbm [resolvable:$true] %s735
          %741 = dma.vmem_to_hbm [thread:$0]  %s734, 2048, %s736, %s721, 64, 64, 4
        $region40: #{tpu_custom_call.1} parent=27 // pred_fallthru
          _
      $region28: #{tpu_custom_call.1} parent=5 // pred_fallthru
        _
      %p742 = scmp.le.s32.totalorder 2, %s11
      // Predicated region
      $region41: #{tpu_custom_call.1} parent=5 // pred_check
        %p743 = pneg %p742
      $region42: #{tpu_custom_call.1} parent=5 // pred_check_branch
        %745 = sbr.rel (%p743) target = $region44
      $region43: #{tpu_custom_call.1} parent=5 // pred_region
        %s746 = ssub.s32 %s11, 2
        // Predicated region
        $region45: #{tpu_custom_call.1} parent=43 // pred_check
          %p747 = pneg %p106
        $region46: #{tpu_custom_call.1} parent=43 // pred_check_branch
          %749 = sbr.rel (%p747) target = $region48
        $region47: #{tpu_custom_call.1} parent=43 // pred_region
          %s750 = sand.u32 %s91, 1
          %s751 = scalar_lea.sflag [#allocation4], %s750
          %s752 = sand.u32 %s91, 1
          %s753 = smul.addr %s752, 128
          %s754 = scalar_lea.vmem [#allocation3], %s753
          %756 = dma.done %s751, 2048
        $region48: #{tpu_custom_call.1} parent=43 // pred_fallthru
          _
      $region44: #{tpu_custom_call.1} parent=5 // pred_fallthru
        _
    $region6: #{tpu_custom_call.1} parent=1 // loop_footer
      %s15 = sadd.s32 1, %s11
    $region7: #{tpu_custom_call.1} parent=1 // loop_footer_branch
      %10 = sbr.rel target = $region3
    $region8: #{tpu_custom_call.1} parent=1 // loop_exit
      _
    %757 = vsyncpa [#allocation4], 1
    %s758 = scalar_lea.sflag [#allocation4], 1
    %759 = vsyncpa %s758, 1

</llo_original>
